<compile_context>
chip_gen: v6e
topology: v6e:2x2x1
jax: 0.10.0
libtpu: 0.0.40
codegen_flags: <defaults>
</compile_context>

<pallas_src>
import numpy as np

import jax
import jax.numpy as jnp
from jax.experimental import pallas as pl
from jax.experimental.pallas import tpu as pltpu


# ---------------------------------------------------------------------------
# Kernel
# ---------------------------------------------------------------------------
def _haar_kernel(x_ref, p_ref, o_ref):
    # x_ref: (1, Cc, Hc, 2W)  -- each row is [even input row | odd input row]
    # p_ref: (Wc, Wc)         -- lane-pairing matrix for one W-chunk, fac folded in
    # o_ref: (1, Cc, 4, Hc, Wo)
    _, cc, hc, w2 = x_ref.shape
    w = w2 // 2
    wc = p_ref.shape[0]          # chunk width (== w when not chunking)
    wco = wc // 2
    nch = w // wc

    p = p_ref[...]
    odt = o_ref.dtype

    for j in range(nch):         # static trip count; chunks are 128-aligned
        lo = j * wc
        # Lane-contiguous slices of the block; merge (Cc,Hc) -> rows is
        # layout-free (Cc==1 or Hc % 8 == 0, guaranteed by _choose_tiles).
        r_ev = x_ref[0, :, :, lo:lo + wc].reshape(cc * hc, wc)       # rows 2i
        r_od = x_ref[0, :, :, w + lo:w + lo + wc].reshape(cc * hc, wc)  # rows 2i+1

        s = r_ev + r_od          # vertical sums  (VPU)
        d = r_ev - r_od          # vertical diffs (VPU)

        # MXU pairs adjacent lanes: cols [0,Wc/2) = fac*(even+odd),
        # cols [Wc/2,Wc) = fac*(even-odd).  HIGHEST keeps f32 accuracy.
        sp = jnp.dot(s, p, precision=jax.lax.Precision.HIGHEST,
                     preferred_element_type=jnp.float32).reshape(cc, hc, wc)
        dp = jnp.dot(d, p, precision=jax.lax.Precision.HIGHEST,
                     preferred_element_type=jnp.float32).reshape(cc, hc, wc)

        c0, c1 = j * wco, (j + 1) * wco
        o_ref[0, :, 0, :, c0:c1] = sp[:, :, :wco].astype(odt)   # fac*( a + b + c + d)
        o_ref[0, :, 1, :, c0:c1] = sp[:, :, wco:].astype(odt)   # fac*( a - b + c - d)
        o_ref[0, :, 2, :, c0:c1] = dp[:, :, :wco].astype(odt)   # fac*( a + b - c - d)
        o_ref[0, :, 3, :, c0:c1] = dp[:, :, wco:].astype(odt)   # fac*( a - b - c + d)


# ---------------------------------------------------------------------------
# Wrapper helpers
# ---------------------------------------------------------------------------
def _pairing_matrix(w, fac, dtype):
    """(W, W) matrix: cols [0,W/2) -> fac*(x[2j]+x[2j+1]); [W/2,W) -> fac*(x[2j]-x[2j+1])."""
    wo = w // 2
    p = np.zeros((w, 2 * wo), np.float32)
    j = np.arange(wo)
    p[2 * j, j] = fac
    p[2 * j + 1, j] = fac
    p[2 * j, wo + j] = fac
    p[2 * j + 1, wo + j] = -fac
    return jnp.asarray(p, dtype=dtype)


def _largest_divisor(n, cap, multiple_of=1):
    cap = max(1, min(cap, n))
    for dv in range(cap, 0, -1):
        if n % dv == 0 and dv % multiple_of == 0:
            return dv
    return None


def _choose_tiles(batch, chans, ho, row_bytes, target_bytes=2 * 1024 * 1024):
    """Pick (channel_chunk, row_chunk) so one input block is ~target_bytes."""
    max_rows = max(1, target_bytes // max(1, row_bytes))
    if ho <= max_rows:
        hc = ho
        # Only widen channels when Hc is sublane-aligned, keeping the in-kernel
        # (Cc, Hc, *) -> (Cc*Hc, *) merge layout-free.
        cc = (_largest_divisor(chans, max(1, max_rows // ho)) or 1) if ho % 8 == 0 else 1
    else:
        hc = _largest_divisor(ho, max_rows, multiple_of=8) or ho
        cc = 1
    # Guarantee a handful of grid steps even for tiny batches so the pipeline
    # (and both TensorCores on v7x) has work to overlap.
    while batch * (chans // cc) * (ho // hc) < 8:
        if cc % 2 == 0:
            cc //= 2
        elif hc % 16 == 0:
            hc //= 2
        else:
            break
    return cc, hc


# ---------------------------------------------------------------------------
# Public entry point
# ---------------------------------------------------------------------------
def haar_downsample(x, rebalance=1.0):
    """Forward pass of HaarDownsampling (rev=False, order_by_wavelet=False)."""
    fac_fwd = 0.5 * rebalance
    B, C, H, W = x.shape
    assert H % 2 == 0 and W % 2 == 0, "HaarDownsampling needs even spatial dims"
    Ho, Wo = H // 2, W // 2

    itemsize = x.dtype.itemsize
    cc, hc = _choose_tiles(B, C, Ho, row_bytes=2 * W * itemsize)
    grid = (B, C // cc, Ho // hc)

    # Chunk width for the MXU lane-pairing: cap flops/element at 2*Wc and keep
    # all in-kernel lane offsets (and output stores) 128-aligned.
    wc = 256 if (W > 256 and W % 256 == 0) else W

    # Free contiguous reshape: each row of the view is [even input row | odd input row].
    x2 = x.reshape(B, C, Ho, 2 * W)
    p = _pairing_matrix(wc, fac_fwd, x.dtype)

    out5 = pl.pallas_call(
        _haar_kernel,
        out_shape=jax.ShapeDtypeStruct((B, C, 4, Ho, Wo), x.dtype),
        grid=grid,
        in_specs=[
            pl.BlockSpec((1, cc, hc, 2 * W), lambda b, ci, hi: (b, ci, hi, 0)),
            pl.BlockSpec((wc, wc), lambda b, ci, hi: (0, 0)),
        ],
        out_specs=pl.BlockSpec((1, cc, 4, hc, Wo), lambda b, ci, hi: (b, ci, 0, hi, 0)),
        compiler_params=pltpu.CompilerParams(
            dimension_semantics=("parallel", "parallel", "parallel"),
            vmem_limit_bytes=32 * 1024 * 1024,
        ),
        cost_estimate=pl.CostEstimate(
            flops=2 * B * C * H * W * (wc + 1),
            transcendentals=0,
            bytes_accessed=2 * B * C * H * W * itemsize,
        ),
    )(x2, p)

    # (B, C, 4, Ho, Wo) -> (B, 4*C, Ho, Wo): free contiguous reshape, grouped-conv order.
    return out5.reshape(B, 4 * C, Ho, Wo)


# ---------------------------------------------------------------------------
# Exact pure-JAX reference (== F.conv2d(x, haar_weights, stride=2, groups=C) * fac)
# ---------------------------------------------------------------------------
def haar_reference(x, rebalance=1.0):
    fac = 0.5 * rebalance
    B, C, H, W = x.shape
    a = x[:, :, 0::2, 0::2]
    b = x[:, :, 0::2, 1::2]
    c = x[:, :, 1::2, 0::2]
    d = x[:, :, 1::2, 1::2]
    comps = jnp.stack(
        [a + b + c + d, a - b + c - d, a + b - c - d, a - b - c + d], axis=2
    )
    return (comps * fac).reshape(B, 4 * C, H // 2, W // 2)


if __name__ == "__main__":
    key = jax.random.PRNGKey(0)
    k0, k1 = jax.random.split(key)

    # Primary small test (matches the module's typical usage).
    B, C, H, W = 2, 4, 16, 16
    x = jax.random.normal(k0, (B, C, H, W), dtype=jnp.float32)
    out = jax.block_until_ready(haar_downsample(x))
    ref = haar_reference(x)
    assert out.shape == (B, 4 * C, H // 2, W // 2), out.shape
    # HIGHEST-precision MXU pairing is f32-accurate (~1e-6); tolerance also
    # covers bf16 multi-pass emulation modes while catching structural bugs.
    assert jnp.allclose(out, ref, atol=2e-2, rtol=2e-2), float(
        jnp.max(jnp.abs(out - ref))
    )

    # Wide-image path (exercises the 256-wide chunked matmul), still tiny.
    xw = jax.random.normal(k1, (1, 2, 8, 512), dtype=jnp.float32)
    outw = jax.block_until_ready(haar_downsample(xw))
    refw = haar_reference(xw)
    assert outw.shape == (1, 8, 4, 256), outw.shape
    assert jnp.allclose(outw, refw, atol=2e-2, rtol=2e-2), float(
        jnp.max(jnp.abs(outw - refw))
    )

    print("KERNEL_OK")
</pallas_src>

<mosaic_0001>
module attributes {stable_mosaic.version = 11 : i64} {
  func.func @_haar_kernel(%arg0: i32, %arg1: i32, %arg2: i32, %arg3: memref<1x1x8x32xf32, #tpu.memory_space<vmem>>, %arg4: memref<16x16xf32, #tpu.memory_space<vmem>>, %arg5: memref<1x1x4x8x8xf32, #tpu.memory_space<vmem>>) attributes {dimension_semantics = [#tpu.dimension_semantics<parallel>, #tpu.dimension_semantics<parallel>, #tpu.dimension_semantics<parallel>], iteration_bounds = array<i64: 2, 4, 1>, scalar_prefetch = 0 : i64, scratch_operands = 0 : i64, tpu.core_type = #tpu.core_type<tc>, window_params = [{transform_indices = @transform_0, window_bounds = array<i64: 1, 1, 8, 32>}, {pipeline_mode = #tpu.pipeline_mode<synchronous>, transform_indices = @transform_1, window_bounds = array<i64: 16, 16>}, {transform_indices = @transform_2, window_bounds = array<i64: 1, 1, 4, 8, 8>}]} {
    %c0 = arith.constant 0 : index
    %c0_0 = arith.constant 0 : index
    %0 = vector.load %arg4[%c0, %c0_0] : memref<16x16xf32, #tpu.memory_space<vmem>>, vector<16x16xf32>
    %c0_1 = arith.constant 0 : index
    %c0_2 = arith.constant 0 : index
    %c0_3 = arith.constant 0 : index
    %c0_4 = arith.constant 0 : index
    %1 = vector.load %arg3[%c0_1, %c0_2, %c0_3, %c0_4] : memref<1x1x8x32xf32, #tpu.memory_space<vmem>>, vector<1x1x8x16xf32>
    %2 = vector.shape_cast %1 : vector<1x1x8x16xf32> to vector<1x8x16xf32>
    %3 = vector.shape_cast %2 : vector<1x8x16xf32> to vector<8x16xf32>
    %c0_5 = arith.constant 0 : index
    %c0_6 = arith.constant 0 : index
    %c0_7 = arith.constant 0 : index
    %c16 = arith.constant 16 : index
    %4 = vector.load %arg3[%c0_5, %c0_6, %c0_7, %c16] : memref<1x1x8x32xf32, #tpu.memory_space<vmem>>, vector<1x1x8x16xf32>
    %5 = vector.shape_cast %4 : vector<1x1x8x16xf32> to vector<1x8x16xf32>
    %6 = vector.shape_cast %5 : vector<1x8x16xf32> to vector<8x16xf32>
    %7 = arith.addf %3, %6 : vector<8x16xf32>
    %8 = arith.subf %3, %6 : vector<8x16xf32>
    %cst = arith.constant dense<0.000000e+00> : vector<8x16xf32>
    %9 = tpu.matmul %7, %0, %cst {dimension_numbers = #tpu.dot_dimension_numbers<[1], [0], [0], [1], [0, 0, 1, 1], [], []>, precision = #tpu.contract_precision<fp32>} : vector<8x16xf32>, vector<16x16xf32>, vector<8x16xf32> -> vector<8x16xf32>
    %10 = vector.shape_cast %9 : vector<8x16xf32> to vector<1x8x16xf32>
    %cst_8 = arith.constant dense<0.000000e+00> : vector<8x16xf32>
    %11 = tpu.matmul %8, %0, %cst_8 {dimension_numbers = #tpu.dot_dimension_numbers<[1], [0], [0], [1], [0, 0, 1, 1], [], []>, precision = #tpu.contract_precision<fp32>} : vector<8x16xf32>, vector<16x16xf32>, vector<8x16xf32> -> vector<8x16xf32>
    %12 = vector.shape_cast %11 : vector<8x16xf32> to vector<1x8x16xf32>
    %13 = vector.extract_strided_slice %10 {offsets = [0, 0, 0], sizes = [1, 8, 8], strides = [1, 1, 1]} : vector<1x8x16xf32> to vector<1x8x8xf32>
    %c0_9 = arith.constant 0 : index
    %c0_10 = arith.constant 0 : index
    %c0_11 = arith.constant 0 : index
    %c0_12 = arith.constant 0 : index
    %c0_13 = arith.constant 0 : index
    %14 = vector.load %arg5[%c0_9, %c0_10, %c0_11, %c0_12, %c0_13] : memref<1x1x4x8x8xf32, #tpu.memory_space<vmem>>, vector<1x1x1x8x8xf32>
    %15 = vector.shape_cast %14 : vector<1x1x1x8x8xf32> to vector<1x8x8xf32>
    %16 = vector.shape_cast %13 : vector<1x8x8xf32> to vector<1x1x1x8x8xf32>
    tpu.vector_store %arg5[%c0_9, %c0_10, %c0_11, %c0_12, %c0_13], %16 {strides = array<i32>} : memref<1x1x4x8x8xf32, #tpu.memory_space<vmem>>, vector<1x1x1x8x8xf32>,
    %17 = vector.extract_strided_slice %10 {offsets = [0, 0, 8], sizes = [1, 8, 8], strides = [1, 1, 1]} : vector<1x8x16xf32> to vector<1x8x8xf32>
    %c0_14 = arith.constant 0 : index
    %c0_15 = arith.constant 0 : index
    %c1 = arith.constant 1 : index
    %c0_16 = arith.constant 0 : index
    %c0_17 = arith.constant 0 : index
    %18 = vector.load %arg5[%c0_14, %c0_15, %c1, %c0_16, %c0_17] : memref<1x1x4x8x8xf32, #tpu.memory_space<vmem>>, vector<1x1x1x8x8xf32>
    %19 = vector.shape_cast %18 : vector<1x1x1x8x8xf32> to vector<1x8x8xf32>
    %20 = vector.shape_cast %17 : vector<1x8x8xf32> to vector<1x1x1x8x8xf32>
    tpu.vector_store %arg5[%c0_14, %c0_15, %c1, %c0_16, %c0_17], %20 {strides = array<i32>} : memref<1x1x4x8x8xf32, #tpu.memory_space<vmem>>, vector<1x1x1x8x8xf32>,
    %21 = vector.extract_strided_slice %12 {offsets = [0, 0, 0], sizes = [1, 8, 8], strides = [1, 1, 1]} : vector<1x8x16xf32> to vector<1x8x8xf32>
    %c0_18 = arith.constant 0 : index
    %c0_19 = arith.constant 0 : index
    %c2 = arith.constant 2 : index
    %c0_20 = arith.constant 0 : index
    %c0_21 = arith.constant 0 : index
    %22 = vector.load %arg5[%c0_18, %c0_19, %c2, %c0_20, %c0_21] : memref<1x1x4x8x8xf32, #tpu.memory_space<vmem>>, vector<1x1x1x8x8xf32>
    %23 = vector.shape_cast %22 : vector<1x1x1x8x8xf32> to vector<1x8x8xf32>
    %24 = vector.shape_cast %21 : vector<1x8x8xf32> to vector<1x1x1x8x8xf32>
    tpu.vector_store %arg5[%c0_18, %c0_19, %c2, %c0_20, %c0_21], %24 {strides = array<i32>} : memref<1x1x4x8x8xf32, #tpu.memory_space<vmem>>, vector<1x1x1x8x8xf32>,
    %25 = vector.extract_strided_slice %12 {offsets = [0, 0, 8], sizes = [1, 8, 8], strides = [1, 1, 1]} : vector<1x8x16xf32> to vector<1x8x8xf32>
    %c0_22 = arith.constant 0 : index
    %c0_23 = arith.constant 0 : index
    %c3 = arith.constant 3 : index
    %c0_24 = arith.constant 0 : index
    %c0_25 = arith.constant 0 : index
    %26 = vector.load %arg5[%c0_22, %c0_23, %c3, %c0_24, %c0_25] : memref<1x1x4x8x8xf32, #tpu.memory_space<vmem>>, vector<1x1x1x8x8xf32>
    %27 = vector.shape_cast %26 : vector<1x1x1x8x8xf32> to vector<1x8x8xf32>
    %28 = vector.shape_cast %25 : vector<1x8x8xf32> to vector<1x1x1x8x8xf32>
    tpu.vector_store %arg5[%c0_22, %c0_23, %c3, %c0_24, %c0_25], %28 {strides = array<i32>} : memref<1x1x4x8x8xf32, #tpu.memory_space<vmem>>, vector<1x1x1x8x8xf32>,
    return
  }
  func.func @transform_0(%arg0: i32, %arg1: i32, %arg2: i32) -> (i32, i32, i32, i32) {
    %c0_i32 = arith.constant 0 : i32
    %c0_i32_0 = arith.constant 0 : i32
    return %arg0, %arg1, %arg2, %c0_i32 : i32, i32, i32, i32
  }
  func.func @transform_1(%arg0: i32, %arg1: i32, %arg2: i32) -> (i32, i32) {
    %c0_i32 = arith.constant 0 : i32
    %c0_i32_0 = arith.constant 0 : i32
    %c0_i32_1 = arith.constant 0 : i32
    return %c0_i32, %c0_i32_0 : i32, i32
  }
  func.func @transform_2(%arg0: i32, %arg1: i32, %arg2: i32) -> (i32, i32, i32, i32, i32) {
    %c0_i32 = arith.constant 0 : i32
    %c0_i32_0 = arith.constant 0 : i32
    %c0_i32_1 = arith.constant 0 : i32
    return %arg0, %arg1, %c0_i32, %arg2, %c0_i32_0 : i32, i32, i32, i32, i32
  }
}

</mosaic_0001>

<llo_original>
// kernel: tpu_custom_call.1
$region0: #{tpu_custom_call.1}
  #allocation0 [shape = 'u32[]', space=smem, size = 0x4, offset = 0x4, fixed_abs, tag = 'smem constant byte address 0x4 - core index']
  #allocation1 [shape = 'u32[144,128]{1,0:T(1,128)}', space=vmem, size = 0x12000, scoped, tag = 'internal scratch']
  %s0 = inlined_call_operand.hbm [shape: f32[2,4,8,32], index: 0, kind: input, shape index: {}]
  %s1 = inlined_call_operand.hbm [shape: f32[16,16], index: 1, kind: input, shape index: {}]
  %s2 = inlined_call_operand.hbm [shape: f32[2,4,4,8,8], index: 2, kind: output, shape index: {}]
  %s3 = sld [smem:[#allocation0]]
  $region49: #{tpu_custom_call.1} parent=0
    _
  %s5 = ssub.s32 1, %s3
  %s6 = scalar_select 0, %s5, %s3
  $region1: #{tpu_custom_call.1} parent=0
    #allocation2 [shape = 'u8[8192]{0}', space=vmem, size = 0x2000, scoped, tag = 'input window, operand 0']
    #allocation3 [shape = 's32[2]{0}', space=sflag, size = 0x8, scoped, tag = 'scoped memory for tpu_custom_call.1']
    #allocation4 [shape = 's32[2]{0}', space=sflag, size = 0x8, scoped, tag = 'scoped memory for tpu_custom_call.1']
    #allocation5 [shape = 'u8[8192]{0}', space=vmem, size = 0x2000, scoped, tag = 'input window, operand 1, single buffered']
    #allocation6 [shape = 's32[1]{0}', space=sflag, size = 0x4, scoped, tag = 'scoped memory for tpu_custom_call.1']
    #allocation7 [shape = 'u8[32768]{0}', space=vmem, size = 0x8000, scoped, tag = 'output window, operand 0']
    %7 = vsyncpa [#allocation3], 0
    %s8 = scalar_lea.sflag [#allocation3], 1
    %9 = vsyncpa %s8, 0
    %10 = vsyncpa [#allocation6], 0
    %11 = vsyncpa [#allocation4], 0
    %s12 = scalar_lea.sflag [#allocation4], 1
    %13 = vsyncpa %s12, 0
    loop: start=0, step=1, limit=10
    $region2: #{tpu_custom_call.1} parent=1 // loop_pre_header
      _
    $region3: #{tpu_custom_call.1} parent=1 // loop_header
      %s15 = sphi 0, %s19
      %p16 = scmp.ge.s32.totalorder %s15, 10
      %s22 = sphi 0, %s41
      %s23 = sphi 0, %s37
      %s24 = sphi 0, %s33
      %s25 = sphi 0, %s22
      %s26 = sphi 0, %s23
      %s27 = sphi 0, %s24
      %s28 = sphi 0, %s25
      %s29 = sphi 0, %s26
      %s30 = sphi 0, %s27
      %s48 = sphi 0, %s50
      %s51 = sphi 0, %s48
      %s52 = sphi 0, %s51
      %s68 = sphi 0, %s52
      %s72 = sphi 0, %s72
      %s74 = sphi 0, %s72
      %s75 = sphi 0, %s74
      %s89 = sphi 0, %s75
      %s99 = sphi 0, %s101
      %s102 = sphi 0, %s99
      %s103 = sphi 0, %s102
      %s119 = sphi 0, %s103
    $region4: #{tpu_custom_call.1} parent=1 // loop_header_branch
      %18 = sbr.rel (%p16) target = $region8
    $region5: #{tpu_custom_call.1} parent=1 // loop_body
      %s20 = ssub.s32 %s15, 1
      %s21 = ssub.s32 %s15, 2
      %s31 = sadd.s32 1, %s24
      %p32 = scmp.ge.s32.totalorder %s31, 1
      %s33 = scalar_select %p32, 0, %s31
      %s34 = sadd.s32 1, %s23
      %s35 = scalar_select %p32, %s34, %s23
      %p36 = scmp.ge.s32.totalorder %s35, 4
      %s37 = scalar_select %p36, 0, %s35
      %s38 = sadd.s32 1, %s22
      %s39 = scalar_select %p36, %s38, %s22
      %p40 = scmp.ge.s32.totalorder %s39, 2
      %s41 = scalar_select %p40, 0, %s39
      %s42 = ssub.s32 %s22, %s41
      %s43 = ssub.s32 %s23, %s37
      %s44 = sor.u32 %s42, %s43
      %s45 = ssub.s32 %s24, %s33
      %s46 = sor.u32 %s44, %s45
      %p47 = scmp.eq.s32.totalorder %s46, 0
      %s49 = sadd.s32 %s48, 1
      %s50 = scalar_select %p47, %s48, %s49
      %p53 = pneg %p47
      %p54 = scmp.eq.s32.totalorder %s15, 7
      %p55 = por %p53, %p54
      %p56 = scmp.ne.s32.totalorder %s48, %s51
      %p57 = scmp.eq.s32.totalorder %s15, 0
      %p58 = por %p56, %p57
      %p59 = scmp.ne.s32.totalorder %s48, %s51
      %p60 = scmp.eq.s32.totalorder %s20, 7
      %p61 = por %p59, %p60
      %p62 = scmp.ne.s32.totalorder %s51, %s52
      %p63 = scmp.eq.s32.totalorder %s20, 0
      %p64 = por %p62, %p63
      %p65 = scmp.ne.s32.totalorder %s51, %s52
      %p66 = scmp.eq.s32.totalorder %s21, 7
      %p67 = por %p65, %p66
      %p69 = scmp.ne.s32.totalorder %s52, %s68
      %p70 = scmp.eq.s32.totalorder %s21, 0
      %p71 = por %p69, %p70
      %s73 = sadd.s32 %s72, 1
      %p76 = scmp.eq.s32.totalorder %s15, 7
      %p77 = scmp.ne.s32.totalorder %s72, %s74
      %p78 = scmp.eq.s32.totalorder %s15, 0
      %p79 = por %p77, %p78
      %p80 = scmp.ne.s32.totalorder %s72, %s74
      %p81 = scmp.eq.s32.totalorder %s20, 7
      %p82 = por %p80, %p81
      %p83 = scmp.ne.s32.totalorder %s74, %s75
      %p84 = scmp.eq.s32.totalorder %s20, 0
      %p85 = por %p83, %p84
      %p86 = scmp.ne.s32.totalorder %s74, %s75
      %p87 = scmp.eq.s32.totalorder %s21, 7
      %p88 = por %p86, %p87
      %p90 = scmp.ne.s32.totalorder %s75, %s89
      %p91 = scmp.eq.s32.totalorder %s21, 0
      %p92 = por %p90, %p91
      %s93 = ssub.s32 %s22, %s41
      %s94 = ssub.s32 %s23, %s37
      %s95 = sor.u32 %s93, %s94
      %s96 = ssub.s32 %s24, %s33
      %s97 = sor.u32 %s95, %s96
      %p98 = scmp.eq.s32.totalorder %s97, 0
      %s100 = sadd.s32 %s99, 1
      %s101 = scalar_select %p98, %s99, %s100
      %p104 = pneg %p98
      %p105 = scmp.eq.s32.totalorder %s15, 7
      %p106 = por %p104, %p105
      %p107 = scmp.ne.s32.totalorder %s99, %s102
      %p108 = scmp.eq.s32.totalorder %s15, 0
      %p109 = por %p107, %p108
      %p110 = scmp.ne.s32.totalorder %s99, %s102
      %p111 = scmp.eq.s32.totalorder %s20, 7
      %p112 = por %p110, %p111
      %p113 = scmp.ne.s32.totalorder %s102, %s103
      %p114 = scmp.eq.s32.totalorder %s20, 0
      %p115 = por %p113, %p114
      %p116 = scmp.ne.s32.totalorder %s102, %s103
      %p117 = scmp.eq.s32.totalorder %s21, 7
      %p118 = por %p116, %p117
      %p120 = scmp.ne.s32.totalorder %s103, %s119
      %p121 = scmp.eq.s32.totalorder %s21, 0
      %p122 = por %p120, %p121
      %p123 = scmp.le.s32.totalorder 1, %s15
      %p124 = scmp.lt.s32.totalorder %s15, 9
      %p125 = pnand %p123, %p124
      %p126 = pneg %p125
      // Predicated region
      $region9: #{tpu_custom_call.1} parent=5 // pred_check
        _
      $region10: #{tpu_custom_call.1} parent=5 // pred_check_branch
        %128 = sbr.rel (%p125) target = $region12
      $region11: #{tpu_custom_call.1} parent=5 // pred_region
        %s129 = ssub.s32 %s15, 1
        // Predicated region
        $region13: #{tpu_custom_call.1} parent=11 // pred_check
          %p130 = pneg %p85
        $region14: #{tpu_custom_call.1} parent=11 // pred_check_branch
          %132 = sbr.rel (%p130) target = $region16
        $region15: #{tpu_custom_call.1} parent=11 // pred_region
          %s134 = ssub.s32 256, 256
          %135 = vsyncadd [#allocation6], %s134
          %s136 = sshll.u32 [#allocation5], 4
          %s137 = int_to_ptr.vmem [resolvable:$true] %s136
          %142 = dma.hbm_to_vmem [thread:$0]  %s1, 256, %s137, [#allocation6], 128, 128, 8
        $region16: #{tpu_custom_call.1} parent=11 // pred_fallthru
          _
      $region12: #{tpu_custom_call.1} parent=5 // pred_fallthru
        _
      %p143 = scmp.lt.s32.totalorder %s15, 8
      // Predicated region
      $region17: #{tpu_custom_call.1} parent=5 // pred_check
        %p144 = pneg %p143
      $region18: #{tpu_custom_call.1} parent=5 // pred_check_branch
        %146 = sbr.rel (%p144) target = $region20
      $region19: #{tpu_custom_call.1} parent=5 // pred_region
        // Predicated region
        $region21: #{tpu_custom_call.1} parent=19 // pred_check
          %p147 = pneg %p58
        $region22: #{tpu_custom_call.1} parent=19 // pred_check_branch
          %149 = sbr.rel (%p147) target = $region24
        $region23: #{tpu_custom_call.1} parent=19 // pred_region
          %s150 = sand.u32 %s48, 1
          %s151 = scalar_lea.sflag [#allocation3], %s150
          %s152 = sand.u32 %s48, 1
          %s153 = smul.addr %s152, 8
          %s154 = scalar_lea.vmem [#allocation2], %s153
          %s156 = ssub.s32 128, 128
          %157 = vsyncadd %s151, %s156
          %s158 = sadd.s32 %s24, %s23
          %s159 = smul.addr %s22, 4
          %s160 = sadd.s32 %s158, %s159
          %s161 = smul.addr %s160, 128
          %s162 = scalar_lea.hbm %s0, %s161
          %s164 = sshll.u32 %s154, 4
          %s165 = int_to_ptr.vmem [resolvable:$true] %s164
          %167 = dma.hbm_to_vmem [thread:$0]  %s162, 128, %s165, %s151
        $region24: #{tpu_custom_call.1} parent=19 // pred_fallthru
          _
      $region20: #{tpu_custom_call.1} parent=5 // pred_fallthru
        _
      %p168 = scmp.le.s32.totalorder 1, %s15
      %p169 = scmp.lt.s32.totalorder %s15, 9
      %p170 = pnand %p168, %p169
      %p171 = pneg %p170
      // Predicated region
      $region25: #{tpu_custom_call.1} parent=5 // pred_check
        _
      $region26: #{tpu_custom_call.1} parent=5 // pred_check_branch
        %173 = sbr.rel (%p170) target = $region28
      $region27: #{tpu_custom_call.1} parent=5 // pred_region
        %s174 = ssub.s32 %s15, 1
        %s175 = sand.u32 %s51, 1
        %s176 = scalar_lea.sflag [#allocation3], %s175
        %s177 = sand.u32 %s51, 1
        %s178 = smul.addr %s177, 8
        %s179 = scalar_lea.vmem [#allocation2], %s178
        // Predicated region
        $region29: #{tpu_custom_call.1} parent=27 // pred_check
          %p180 = pneg %p64
        $region30: #{tpu_custom_call.1} parent=27 // pred_check_branch
          %182 = sbr.rel (%p180) target = $region32
        $region31: #{tpu_custom_call.1} parent=27 // pred_region
          %183 = dma.done %s176, 128
        $region32: #{tpu_custom_call.1} parent=27 // pred_fallthru
          _
        // Predicated region
        $region33: #{tpu_custom_call.1} parent=27 // pred_check
          %p184 = pneg %p85
        $region34: #{tpu_custom_call.1} parent=27 // pred_check_branch
          %186 = sbr.rel (%p184) target = $region36
        $region35: #{tpu_custom_call.1} parent=27 // pred_region
          %187 = dma.done [#allocation6], 256
        $region36: #{tpu_custom_call.1} parent=27 // pred_fallthru
          _
        %s188 = sand.u32 %s51, 1
        %s189 = scalar_lea.sflag [#allocation3], %s188
        %s190 = sand.u32 %s51, 1
        %s191 = smul.addr %s190, 8
        %s192 = scalar_lea.vmem [#allocation2], %s191
        %p193 = pneg %p64
        %p194 = pneg %p61
        %p195 = pneg %p85
        %p196 = pneg %p82
        %p197 = pneg %p115
        %p198 = pneg %p112
        %s199 = sand.u32 %s102, 1
        %s200 = scalar_lea.sflag [#allocation4], %s199
        %s201 = sand.u32 %s102, 1
        %s202 = smul.addr %s201, 32
        %s203 = scalar_lea.vmem [#allocation7], %s202
        %v204 = vld [vmem:[#allocation5] sm:$0xff]
        %v205 = vld [vmem:[#allocation5 + $0x8] sm:$0xff]
        %v206 = vld [vmem:[%s179] sm:$0xff]
        %208 = vrot.lane.b32.xlu0 %v206, 112
        %v209 = vpop.permute.xlu0 %208
        %v211 = vadd.f32 %v206, %v209
        %v212 = vsub.f32 %v206, %v209
        %vm213 = vcmask 130048
        %v215 = vsel %vm213, %v211, 0
        %217 = vmatprep.subr.mxu0 0.0
        %218 = vmatpush1.msra.mxu0 0.0
        %219 = vmatprep.subr.mxu0 0.0
        %220 = vmatpush1.msra.mxu0 0.0
        %221 = vmatprep.subr.mxu0 0.0
        %222 = vmatpush1.msra.mxu0 0.0
        %223 = vmatprep.subr.mxu0 0.0
        %224 = vmatpush1.msra.mxu0 0.0
        %225 = vmatprep.subr.mxu0 0.0
        %226 = vmatpush1.msra.mxu0 0.0
        %227 = vmatprep.subr.mxu0 0.0
        %228 = vmatpush1.msra.mxu0 0.0
        %229 = vmatprep.subr.mxu0 0.0
        %230 = vmatpush1.msra.mxu0 0.0
        %231 = vmatprep.subr.mxu0 0.0
        %232 = vmatpush1.msra.mxu0 0.0
        %233 = vmatprep.subr.mxu0 0.0
        %234 = vmatpush1.msra.mxu0 0.0
        %235 = vmatprep.subr.mxu0 0.0
        %236 = vmatpush1.msra.mxu0 0.0
        %237 = vmatprep.subr.mxu0 0.0
        %238 = vmatpush1.msra.mxu0 0.0
        %239 = vmatprep.subr.mxu0 0.0
        %240 = vmatpush1.msra.mxu0 0.0
        %241 = vmatprep.subr.mxu0 0.0
        %242 = vmatpush1.msra.mxu0 0.0
        %243 = vmatprep.subr.mxu0 0.0
        %244 = vmatpush1.msra.mxu0 0.0
        %245 = vmatprep.subr.mxu0 0.0
        %v246 = vand.u32 %v205, 4294901760
        %247 = vmatpush1.msra.mxu0 %v246
        %248 = vmatprep.subr.mxu0 0.0
        %v249 = vand.u32 %v204, 4294901760
        %250 = vmatpush1.msra.mxu0 %v249
        %251 = vmatprep.subr.mxu0 0.0
        %252 = vmatpush2.msra.mxu0 0.0
        %253 = vmatprep.subr.mxu0 0.0
        %254 = vmatpush2.msra.mxu0 0.0
        %255 = vmatprep.subr.mxu0 0.0
        %256 = vmatpush2.msra.mxu0 0.0
        %257 = vmatprep.subr.mxu0 0.0
        %258 = vmatpush2.msra.mxu0 0.0
        %259 = vmatprep.subr.mxu0 0.0
        %260 = vmatpush2.msra.mxu0 0.0
        %261 = vmatprep.subr.mxu0 0.0
        %262 = vmatpush2.msra.mxu0 0.0
        %263 = vmatprep.subr.mxu0 0.0
        %264 = vmatpush2.msra.mxu0 0.0
        %265 = vmatprep.subr.mxu0 0.0
        %266 = vmatpush2.msra.mxu0 0.0
        %267 = vmatprep.subr.mxu0 0.0
        %268 = vmatpush2.msra.mxu0 0.0
        %269 = vmatprep.subr.mxu0 0.0
        %270 = vmatpush2.msra.mxu0 0.0
        %271 = vmatprep.subr.mxu0 0.0
        %272 = vmatpush2.msra.mxu0 0.0
        %273 = vmatprep.subr.mxu0 0.0
        %274 = vmatpush2.msra.mxu0 0.0
        %275 = vmatprep.subr.mxu0 0.0
        %276 = vmatpush2.msra.mxu0 0.0
        %277 = vmatprep.subr.mxu0 0.0
        %278 = vmatpush2.msra.mxu0 0.0
        %279 = vmatprep.subr.mxu0 0.0
        %280 = vmatpush2.msra.mxu0 0.0
        %281 = vmatprep.subr.mxu0 0.0
        %282 = vmatpush2.msra.mxu0 0.0
        %283 = vmatprep.mubr.f32.mxu0 0.0
        %v284 = vand.u32 %v215, 4294901760
        %v285 = vsub.f32 %v215, %v284
        %v286 = vand.u32 %v285, 4294901760
        %v287 = vsub.f32 %v285, %v286
        %v288 = vand.u32 %v287, 4294901760
        %289 = vmatmul.mubr.f32.gmra.mxu0 %v288
        %v290 = vpop.f32.mrf.mxu0
        %v291 = vadd.f32 0.0, %v290
        %v292 = vpop.f32.mrf.mxu0
        %293 = vdwg.mxu0
        %294 = vmatprep.subr.mxu0 0.0
        %295 = vmatpush1.msra.mxu0 0.0
        %296 = vmatprep.subr.mxu0 0.0
        %297 = vmatpush1.msra.mxu0 0.0
        %298 = vmatprep.subr.mxu0 0.0
        %299 = vmatpush1.msra.mxu0 0.0
        %300 = vmatprep.subr.mxu0 0.0
        %301 = vmatpush1.msra.mxu0 0.0
        %302 = vmatprep.subr.mxu0 0.0
        %303 = vmatpush1.msra.mxu0 0.0
        %304 = vmatprep.subr.mxu0 0.0
        %305 = vmatpush1.msra.mxu0 0.0
        %306 = vmatprep.subr.mxu0 0.0
        %307 = vmatpush1.msra.mxu0 0.0
        %308 = vmatprep.subr.mxu0 0.0
        %309 = vmatpush1.msra.mxu0 0.0
        %310 = vmatprep.subr.mxu0 0.0
        %311 = vmatpush1.msra.mxu0 0.0
        %312 = vmatprep.subr.mxu0 0.0
        %313 = vmatpush1.msra.mxu0 0.0
        %314 = vmatprep.subr.mxu0 0.0
        %315 = vmatpush1.msra.mxu0 0.0
        %316 = vmatprep.subr.mxu0 0.0
        %317 = vmatpush1.msra.mxu0 0.0
        %318 = vmatprep.subr.mxu0 0.0
        %319 = vmatpush1.msra.mxu0 0.0
        %320 = vmatprep.subr.mxu0 0.0
        %321 = vmatpush1.msra.mxu0 0.0
        %322 = vmatprep.subr.mxu0 0.0
        %v323 = vand.u32 %v205, 4294901760
        %v324 = vsub.f32 %v205, %v323
        %v325 = vand.u32 %v324, 4294901760
        %v326 = vsub.f32 %v324, %v325
        %v327 = vand.u32 %v326, 4294901760
        %328 = vmatpush1.msra.mxu0 %v327
        %329 = vmatprep.subr.mxu0 0.0
        %v330 = vand.u32 %v204, 4294901760
        %v331 = vsub.f32 %v204, %v330
        %v332 = vand.u32 %v331, 4294901760
        %v333 = vsub.f32 %v331, %v332
        %v334 = vand.u32 %v333, 4294901760
        %335 = vmatpush1.msra.mxu0 %v334
        %336 = vmatprep.subr.mxu0 0.0
        %337 = vmatpush2.msra.mxu0 0.0
        %338 = vmatprep.subr.mxu0 0.0
        %339 = vmatpush2.msra.mxu0 0.0
        %340 = vmatprep.subr.mxu0 0.0
        %341 = vmatpush2.msra.mxu0 0.0
        %342 = vmatprep.subr.mxu0 0.0
        %343 = vmatpush2.msra.mxu0 0.0
        %344 = vmatprep.subr.mxu0 0.0
        %345 = vmatpush2.msra.mxu0 0.0
        %346 = vmatprep.subr.mxu0 0.0
        %347 = vmatpush2.msra.mxu0 0.0
        %348 = vmatprep.subr.mxu0 0.0
        %349 = vmatpush2.msra.mxu0 0.0
        %350 = vmatprep.subr.mxu0 0.0
        %351 = vmatpush2.msra.mxu0 0.0
        %352 = vmatprep.subr.mxu0 0.0
        %353 = vmatpush2.msra.mxu0 0.0
        %354 = vmatprep.subr.mxu0 0.0
        %355 = vmatpush2.msra.mxu0 0.0
        %356 = vmatprep.subr.mxu0 0.0
        %357 = vmatpush2.msra.mxu0 0.0
        %358 = vmatprep.subr.mxu0 0.0
        %359 = vmatpush2.msra.mxu0 0.0
        %360 = vmatprep.subr.mxu0 0.0
        %361 = vmatpush2.msra.mxu0 0.0
        %362 = vmatprep.subr.mxu0 0.0
        %363 = vmatpush2.msra.mxu0 0.0
        %364 = vmatprep.subr.mxu0 0.0
        %365 = vmatpush2.msra.mxu0 0.0
        %366 = vmatprep.subr.mxu0 0.0
        %367 = vmatpush2.msra.mxu0 0.0
        %368 = vmatprep.mubr.f32.mxu0 0.0
        %v369 = vand.u32 %v215, 4294901760
        %370 = vmatmul.mubr.f32.gmra.mxu0 %v369
        %v371 = vpop.f32.mrf.mxu0
        %v372 = vadd.f32 %v291, %v371
        %v373 = vpop.f32.mrf.mxu0
        %374 = vdwg.mxu0
        %375 = vmatprep.subr.mxu0 0.0
        %376 = vmatpush1.msra.mxu0 0.0
        %377 = vmatprep.subr.mxu0 0.0
        %378 = vmatpush1.msra.mxu0 0.0
        %379 = vmatprep.subr.mxu0 0.0
        %380 = vmatpush1.msra.mxu0 0.0
        %381 = vmatprep.subr.mxu0 0.0
        %382 = vmatpush1.msra.mxu0 0.0
        %383 = vmatprep.subr.mxu0 0.0
        %384 = vmatpush1.msra.mxu0 0.0
        %385 = vmatprep.subr.mxu0 0.0
        %386 = vmatpush1.msra.mxu0 0.0
        %387 = vmatprep.subr.mxu0 0.0
        %388 = vmatpush1.msra.mxu0 0.0
        %389 = vmatprep.subr.mxu0 0.0
        %390 = vmatpush1.msra.mxu0 0.0
        %391 = vmatprep.subr.mxu0 0.0
        %392 = vmatpush1.msra.mxu0 0.0
        %393 = vmatprep.subr.mxu0 0.0
        %394 = vmatpush1.msra.mxu0 0.0
        %395 = vmatprep.subr.mxu0 0.0
        %396 = vmatpush1.msra.mxu0 0.0
        %397 = vmatprep.subr.mxu0 0.0
        %398 = vmatpush1.msra.mxu0 0.0
        %399 = vmatprep.subr.mxu0 0.0
        %400 = vmatpush1.msra.mxu0 0.0
        %401 = vmatprep.subr.mxu0 0.0
        %402 = vmatpush1.msra.mxu0 0.0
        %403 = vmatprep.subr.mxu0 0.0
        %v404 = vand.u32 %v205, 4294901760
        %v405 = vsub.f32 %v205, %v404
        %406 = vmatpush1.msra.mxu0 %v405
        %407 = vmatprep.subr.mxu0 0.0
        %v408 = vand.u32 %v204, 4294901760
        %v409 = vsub.f32 %v204, %v408
        %410 = vmatpush1.msra.mxu0 %v409
        %411 = vmatprep.subr.mxu0 0.0
        %412 = vmatpush2.msra.mxu0 0.0
        %413 = vmatprep.subr.mxu0 0.0
        %414 = vmatpush2.msra.mxu0 0.0
        %415 = vmatprep.subr.mxu0 0.0
        %416 = vmatpush2.msra.mxu0 0.0
        %417 = vmatprep.subr.mxu0 0.0
        %418 = vmatpush2.msra.mxu0 0.0
        %419 = vmatprep.subr.mxu0 0.0
        %420 = vmatpush2.msra.mxu0 0.0
        %421 = vmatprep.subr.mxu0 0.0
        %422 = vmatpush2.msra.mxu0 0.0
        %423 = vmatprep.subr.mxu0 0.0
        %424 = vmatpush2.msra.mxu0 0.0
        %425 = vmatprep.subr.mxu0 0.0
        %426 = vmatpush2.msra.mxu0 0.0
        %427 = vmatprep.subr.mxu0 0.0
        %428 = vmatpush2.msra.mxu0 0.0
        %429 = vmatprep.subr.mxu0 0.0
        %430 = vmatpush2.msra.mxu0 0.0
        %431 = vmatprep.subr.mxu0 0.0
        %432 = vmatpush2.msra.mxu0 0.0
        %433 = vmatprep.subr.mxu0 0.0
        %434 = vmatpush2.msra.mxu0 0.0
        %435 = vmatprep.subr.mxu0 0.0
        %436 = vmatpush2.msra.mxu0 0.0
        %437 = vmatprep.subr.mxu0 0.0
        %438 = vmatpush2.msra.mxu0 0.0
        %439 = vmatprep.subr.mxu0 0.0
        %440 = vmatpush2.msra.mxu0 0.0
        %441 = vmatprep.subr.mxu0 0.0
        %442 = vmatpush2.msra.mxu0 0.0
        %443 = vmatprep.mubr.f32.mxu0 0.0
        %v444 = vand.u32 %v215, 4294901760
        %v445 = vsub.f32 %v215, %v444
        %446 = vmatmul.mubr.f32.gmra.mxu0 %v445
        %v447 = vpop.f32.mrf.mxu0
        %v448 = vadd.f32 %v372, %v447
        %v449 = vpop.f32.mrf.mxu0
        %450 = vdwg.mxu0
        %451 = vmatprep.subr.mxu0 0.0
        %452 = vmatpush1.msra.mxu0 0.0
        %453 = vmatprep.subr.mxu0 0.0
        %454 = vmatpush1.msra.mxu0 0.0
        %455 = vmatprep.subr.mxu0 0.0
        %456 = vmatpush1.msra.mxu0 0.0
        %457 = vmatprep.subr.mxu0 0.0
        %458 = vmatpush1.msra.mxu0 0.0
        %459 = vmatprep.subr.mxu0 0.0
        %460 = vmatpush1.msra.mxu0 0.0
        %461 = vmatprep.subr.mxu0 0.0
        %462 = vmatpush1.msra.mxu0 0.0
        %463 = vmatprep.subr.mxu0 0.0
        %464 = vmatpush1.msra.mxu0 0.0
        %465 = vmatprep.subr.mxu0 0.0
        %466 = vmatpush1.msra.mxu0 0.0
        %467 = vmatprep.subr.mxu0 0.0
        %468 = vmatpush1.msra.mxu0 0.0
        %469 = vmatprep.subr.mxu0 0.0
        %470 = vmatpush1.msra.mxu0 0.0
        %471 = vmatprep.subr.mxu0 0.0
        %472 = vmatpush1.msra.mxu0 0.0
        %473 = vmatprep.subr.mxu0 0.0
        %474 = vmatpush1.msra.mxu0 0.0
        %475 = vmatprep.subr.mxu0 0.0
        %476 = vmatpush1.msra.mxu0 0.0
        %477 = vmatprep.subr.mxu0 0.0
        %478 = vmatpush1.msra.mxu0 0.0
        %479 = vmatprep.subr.mxu0 0.0
        %v480 = vand.u32 %v205, 4294901760
        %481 = vmatpush1.msra.mxu0 %v480
        %482 = vmatprep.subr.mxu0 0.0
        %v483 = vand.u32 %v204, 4294901760
        %484 = vmatpush1.msra.mxu0 %v483
        %485 = vmatprep.subr.mxu0 0.0
        %486 = vmatpush2.msra.mxu0 0.0
        %487 = vmatprep.subr.mxu0 0.0
        %488 = vmatpush2.msra.mxu0 0.0
        %489 = vmatprep.subr.mxu0 0.0
        %490 = vmatpush2.msra.mxu0 0.0
        %491 = vmatprep.subr.mxu0 0.0
        %492 = vmatpush2.msra.mxu0 0.0
        %493 = vmatprep.subr.mxu0 0.0
        %494 = vmatpush2.msra.mxu0 0.0
        %495 = vmatprep.subr.mxu0 0.0
        %496 = vmatpush2.msra.mxu0 0.0
        %497 = vmatprep.subr.mxu0 0.0
        %498 = vmatpush2.msra.mxu0 0.0
        %499 = vmatprep.subr.mxu0 0.0
        %500 = vmatpush2.msra.mxu0 0.0
        %501 = vmatprep.subr.mxu0 0.0
        %502 = vmatpush2.msra.mxu0 0.0
        %503 = vmatprep.subr.mxu0 0.0
        %504 = vmatpush2.msra.mxu0 0.0
        %505 = vmatprep.subr.mxu0 0.0
        %506 = vmatpush2.msra.mxu0 0.0
        %507 = vmatprep.subr.mxu0 0.0
        %508 = vmatpush2.msra.mxu0 0.0
        %509 = vmatprep.subr.mxu0 0.0
        %510 = vmatpush2.msra.mxu0 0.0
        %511 = vmatprep.subr.mxu0 0.0
        %512 = vmatpush2.msra.mxu0 0.0
        %513 = vmatprep.subr.mxu0 0.0
        %514 = vmatpush2.msra.mxu0 0.0
        %515 = vmatprep.subr.mxu0 0.0
        %516 = vmatpush2.msra.mxu0 0.0
        %517 = vmatprep.mubr.f32.mxu0 0.0
        %v518 = vand.u32 %v215, 4294901760
        %v519 = vsub.f32 %v215, %v518
        %v520 = vand.u32 %v519, 4294901760
        %521 = vmatmul.mubr.f32.gmra.mxu0 %v520
        %v522 = vpop.f32.mrf.mxu0
        %v523 = vadd.f32 %v448, %v522
        %v524 = vpop.f32.mrf.mxu0
        %525 = vdwg.mxu0
        %526 = vmatprep.subr.mxu0 0.0
        %527 = vmatpush1.msra.mxu0 0.0
        %528 = vmatprep.subr.mxu0 0.0
        %529 = vmatpush1.msra.mxu0 0.0
        %530 = vmatprep.subr.mxu0 0.0
        %531 = vmatpush1.msra.mxu0 0.0
        %532 = vmatprep.subr.mxu0 0.0
        %533 = vmatpush1.msra.mxu0 0.0
        %534 = vmatprep.subr.mxu0 0.0
        %535 = vmatpush1.msra.mxu0 0.0
        %536 = vmatprep.subr.mxu0 0.0
        %537 = vmatpush1.msra.mxu0 0.0
        %538 = vmatprep.subr.mxu0 0.0
        %539 = vmatpush1.msra.mxu0 0.0
        %540 = vmatprep.subr.mxu0 0.0
        %541 = vmatpush1.msra.mxu0 0.0
        %542 = vmatprep.subr.mxu0 0.0
        %543 = vmatpush1.msra.mxu0 0.0
        %544 = vmatprep.subr.mxu0 0.0
        %545 = vmatpush1.msra.mxu0 0.0
        %546 = vmatprep.subr.mxu0 0.0
        %547 = vmatpush1.msra.mxu0 0.0
        %548 = vmatprep.subr.mxu0 0.0
        %549 = vmatpush1.msra.mxu0 0.0
        %550 = vmatprep.subr.mxu0 0.0
        %551 = vmatpush1.msra.mxu0 0.0
        %552 = vmatprep.subr.mxu0 0.0
        %553 = vmatpush1.msra.mxu0 0.0
        %554 = vmatprep.subr.mxu0 0.0
        %v555 = vand.u32 %v205, 4294901760
        %v556 = vsub.f32 %v205, %v555
        %v557 = vand.u32 %v556, 4294901760
        %558 = vmatpush1.msra.mxu0 %v557
        %559 = vmatprep.subr.mxu0 0.0
        %v560 = vand.u32 %v204, 4294901760
        %v561 = vsub.f32 %v204, %v560
        %v562 = vand.u32 %v561, 4294901760
        %563 = vmatpush1.msra.mxu0 %v562
        %564 = vmatprep.subr.mxu0 0.0
        %565 = vmatpush2.msra.mxu0 0.0
        %566 = vmatprep.subr.mxu0 0.0
        %567 = vmatpush2.msra.mxu0 0.0
        %568 = vmatprep.subr.mxu0 0.0
        %569 = vmatpush2.msra.mxu0 0.0
        %570 = vmatprep.subr.mxu0 0.0
        %571 = vmatpush2.msra.mxu0 0.0
        %572 = vmatprep.subr.mxu0 0.0
        %573 = vmatpush2.msra.mxu0 0.0
        %574 = vmatprep.subr.mxu0 0.0
        %575 = vmatpush2.msra.mxu0 0.0
        %576 = vmatprep.subr.mxu0 0.0
        %577 = vmatpush2.msra.mxu0 0.0
        %578 = vmatprep.subr.mxu0 0.0
        %579 = vmatpush2.msra.mxu0 0.0
        %580 = vmatprep.subr.mxu0 0.0
        %581 = vmatpush2.msra.mxu0 0.0
        %582 = vmatprep.subr.mxu0 0.0
        %583 = vmatpush2.msra.mxu0 0.0
        %584 = vmatprep.subr.mxu0 0.0
        %585 = vmatpush2.msra.mxu0 0.0
        %586 = vmatprep.subr.mxu0 0.0
        %587 = vmatpush2.msra.mxu0 0.0
        %588 = vmatprep.subr.mxu0 0.0
        %589 = vmatpush2.msra.mxu0 0.0
        %590 = vmatprep.subr.mxu0 0.0
        %591 = vmatpush2.msra.mxu0 0.0
        %592 = vmatprep.subr.mxu0 0.0
        %593 = vmatpush2.msra.mxu0 0.0
        %594 = vmatprep.subr.mxu0 0.0
        %595 = vmatpush2.msra.mxu0 0.0
        %596 = vmatprep.mubr.f32.mxu0 0.0
        %v597 = vand.u32 %v215, 4294901760
        %598 = vmatmul.mubr.f32.gmra.mxu0 %v597
        %v599 = vpop.f32.mrf.mxu0
        %v600 = vadd.f32 %v523, %v599
        %v601 = vpop.f32.mrf.mxu0
        %602 = vdwg.mxu0
        %603 = vmatprep.subr.mxu0 0.0
        %604 = vmatpush1.msra.mxu0 0.0
        %605 = vmatprep.subr.mxu0 0.0
        %606 = vmatpush1.msra.mxu0 0.0
        %607 = vmatprep.subr.mxu0 0.0
        %608 = vmatpush1.msra.mxu0 0.0
        %609 = vmatprep.subr.mxu0 0.0
        %610 = vmatpush1.msra.mxu0 0.0
        %611 = vmatprep.subr.mxu0 0.0
        %612 = vmatpush1.msra.mxu0 0.0
        %613 = vmatprep.subr.mxu0 0.0
        %614 = vmatpush1.msra.mxu0 0.0
        %615 = vmatprep.subr.mxu0 0.0
        %616 = vmatpush1.msra.mxu0 0.0
        %617 = vmatprep.subr.mxu0 0.0
        %618 = vmatpush1.msra.mxu0 0.0
        %619 = vmatprep.subr.mxu0 0.0
        %620 = vmatpush1.msra.mxu0 0.0
        %621 = vmatprep.subr.mxu0 0.0
        %622 = vmatpush1.msra.mxu0 0.0
        %623 = vmatprep.subr.mxu0 0.0
        %624 = vmatpush1.msra.mxu0 0.0
        %625 = vmatprep.subr.mxu0 0.0
        %626 = vmatpush1.msra.mxu0 0.0
        %627 = vmatprep.subr.mxu0 0.0
        %628 = vmatpush1.msra.mxu0 0.0
        %629 = vmatprep.subr.mxu0 0.0
        %630 = vmatpush1.msra.mxu0 0.0
        %631 = vmatprep.subr.mxu0 0.0
        %v632 = vand.u32 %v205, 4294901760
        %633 = vmatpush1.msra.mxu0 %v632
        %634 = vmatprep.subr.mxu0 0.0
        %v635 = vand.u32 %v204, 4294901760
        %636 = vmatpush1.msra.mxu0 %v635
        %637 = vmatprep.subr.mxu0 0.0
        %638 = vmatpush2.msra.mxu0 0.0
        %639 = vmatprep.subr.mxu0 0.0
        %640 = vmatpush2.msra.mxu0 0.0
        %641 = vmatprep.subr.mxu0 0.0
        %642 = vmatpush2.msra.mxu0 0.0
        %643 = vmatprep.subr.mxu0 0.0
        %644 = vmatpush2.msra.mxu0 0.0
        %645 = vmatprep.subr.mxu0 0.0
        %646 = vmatpush2.msra.mxu0 0.0
        %647 = vmatprep.subr.mxu0 0.0
        %648 = vmatpush2.msra.mxu0 0.0
        %649 = vmatprep.subr.mxu0 0.0
        %650 = vmatpush2.msra.mxu0 0.0
        %651 = vmatprep.subr.mxu0 0.0
        %652 = vmatpush2.msra.mxu0 0.0
        %653 = vmatprep.subr.mxu0 0.0
        %654 = vmatpush2.msra.mxu0 0.0
        %655 = vmatprep.subr.mxu0 0.0
        %656 = vmatpush2.msra.mxu0 0.0
        %657 = vmatprep.subr.mxu0 0.0
        %658 = vmatpush2.msra.mxu0 0.0
        %659 = vmatprep.subr.mxu0 0.0
        %660 = vmatpush2.msra.mxu0 0.0
        %661 = vmatprep.subr.mxu0 0.0
        %662 = vmatpush2.msra.mxu0 0.0
        %663 = vmatprep.subr.mxu0 0.0
        %664 = vmatpush2.msra.mxu0 0.0
        %665 = vmatprep.subr.mxu0 0.0
        %666 = vmatpush2.msra.mxu0 0.0
        %667 = vmatprep.subr.mxu0 0.0
        %668 = vmatpush2.msra.mxu0 0.0
        %669 = vmatprep.mubr.f32.mxu0 0.0
        %v670 = vand.u32 %v215, 4294901760
        %671 = vmatmul.mubr.f32.gmra.mxu0 %v670
        %v672 = vpop.f32.mrf.mxu0
        %v673 = vadd.f32 %v600, %v672
        %v674 = vpop.f32.mrf.mxu0
        %675 = vdwg.mxu0
        %v677 = vsel %vm213, %v212, 0
        %679 = vmatprep.subr.mxu0 0.0
        %680 = vmatpush1.msra.mxu0 0.0
        %681 = vmatprep.subr.mxu0 0.0
        %682 = vmatpush1.msra.mxu0 0.0
        %683 = vmatprep.subr.mxu0 0.0
        %684 = vmatpush1.msra.mxu0 0.0
        %685 = vmatprep.subr.mxu0 0.0
        %686 = vmatpush1.msra.mxu0 0.0
        %687 = vmatprep.subr.mxu0 0.0
        %688 = vmatpush1.msra.mxu0 0.0
        %689 = vmatprep.subr.mxu0 0.0
        %690 = vmatpush1.msra.mxu0 0.0
        %691 = vmatprep.subr.mxu0 0.0
        %692 = vmatpush1.msra.mxu0 0.0
        %693 = vmatprep.subr.mxu0 0.0
        %694 = vmatpush1.msra.mxu0 0.0
        %695 = vmatprep.subr.mxu0 0.0
        %696 = vmatpush1.msra.mxu0 0.0
        %697 = vmatprep.subr.mxu0 0.0
        %698 = vmatpush1.msra.mxu0 0.0
        %699 = vmatprep.subr.mxu0 0.0
        %700 = vmatpush1.msra.mxu0 0.0
        %701 = vmatprep.subr.mxu0 0.0
        %702 = vmatpush1.msra.mxu0 0.0
        %703 = vmatprep.subr.mxu0 0.0
        %704 = vmatpush1.msra.mxu0 0.0
        %705 = vmatprep.subr.mxu0 0.0
        %706 = vmatpush1.msra.mxu0 0.0
        %707 = vmatprep.subr.mxu0 0.0
        %v708 = vand.u32 %v205, 4294901760
        %709 = vmatpush1.msra.mxu0 %v708
        %710 = vmatprep.subr.mxu0 0.0
        %v711 = vand.u32 %v204, 4294901760
        %712 = vmatpush1.msra.mxu0 %v711
        %713 = vmatprep.subr.mxu0 0.0
        %714 = vmatpush2.msra.mxu0 0.0
        %715 = vmatprep.subr.mxu0 0.0
        %716 = vmatpush2.msra.mxu0 0.0
        %717 = vmatprep.subr.mxu0 0.0
        %718 = vmatpush2.msra.mxu0 0.0
        %719 = vmatprep.subr.mxu0 0.0
        %720 = vmatpush2.msra.mxu0 0.0
        %721 = vmatprep.subr.mxu0 0.0
        %722 = vmatpush2.msra.mxu0 0.0
        %723 = vmatprep.subr.mxu0 0.0
        %724 = vmatpush2.msra.mxu0 0.0
        %725 = vmatprep.subr.mxu0 0.0
        %726 = vmatpush2.msra.mxu0 0.0
        %727 = vmatprep.subr.mxu0 0.0
        %728 = vmatpush2.msra.mxu0 0.0
        %729 = vmatprep.subr.mxu0 0.0
        %730 = vmatpush2.msra.mxu0 0.0
        %731 = vmatprep.subr.mxu0 0.0
        %732 = vmatpush2.msra.mxu0 0.0
        %733 = vmatprep.subr.mxu0 0.0
        %734 = vmatpush2.msra.mxu0 0.0
        %735 = vmatprep.subr.mxu0 0.0
        %736 = vmatpush2.msra.mxu0 0.0
        %737 = vmatprep.subr.mxu0 0.0
        %738 = vmatpush2.msra.mxu0 0.0
        %739 = vmatprep.subr.mxu0 0.0
        %740 = vmatpush2.msra.mxu0 0.0
        %741 = vmatprep.subr.mxu0 0.0
        %742 = vmatpush2.msra.mxu0 0.0
        %743 = vmatprep.subr.mxu0 0.0
        %744 = vmatpush2.msra.mxu0 0.0
        %745 = vmatprep.mubr.f32.mxu0 0.0
        %v746 = vand.u32 %v677, 4294901760
        %v747 = vsub.f32 %v677, %v746
        %v748 = vand.u32 %v747, 4294901760
        %v749 = vsub.f32 %v747, %v748
        %v750 = vand.u32 %v749, 4294901760
        %751 = vmatmul.mubr.f32.gmra.mxu0 %v750
        %v752 = vpop.f32.mrf.mxu0
        %v753 = vadd.f32 0.0, %v752
        %v754 = vpop.f32.mrf.mxu0
        %755 = vdwg.mxu0
        %756 = vmatprep.subr.mxu0 0.0
        %757 = vmatpush1.msra.mxu0 0.0
        %758 = vmatprep.subr.mxu0 0.0
        %759 = vmatpush1.msra.mxu0 0.0
        %760 = vmatprep.subr.mxu0 0.0
        %761 = vmatpush1.msra.mxu0 0.0
        %762 = vmatprep.subr.mxu0 0.0
        %763 = vmatpush1.msra.mxu0 0.0
        %764 = vmatprep.subr.mxu0 0.0
        %765 = vmatpush1.msra.mxu0 0.0
        %766 = vmatprep.subr.mxu0 0.0
        %767 = vmatpush1.msra.mxu0 0.0
        %768 = vmatprep.subr.mxu0 0.0
        %769 = vmatpush1.msra.mxu0 0.0
        %770 = vmatprep.subr.mxu0 0.0
        %771 = vmatpush1.msra.mxu0 0.0
        %772 = vmatprep.subr.mxu0 0.0
        %773 = vmatpush1.msra.mxu0 0.0
        %774 = vmatprep.subr.mxu0 0.0
        %775 = vmatpush1.msra.mxu0 0.0
        %776 = vmatprep.subr.mxu0 0.0
        %777 = vmatpush1.msra.mxu0 0.0
        %778 = vmatprep.subr.mxu0 0.0
        %779 = vmatpush1.msra.mxu0 0.0
        %780 = vmatprep.subr.mxu0 0.0
        %781 = vmatpush1.msra.mxu0 0.0
        %782 = vmatprep.subr.mxu0 0.0
        %783 = vmatpush1.msra.mxu0 0.0
        %784 = vmatprep.subr.mxu0 0.0
        %v785 = vand.u32 %v205, 4294901760
        %v786 = vsub.f32 %v205, %v785
        %v787 = vand.u32 %v786, 4294901760
        %v788 = vsub.f32 %v786, %v787
        %v789 = vand.u32 %v788, 4294901760
        %790 = vmatpush1.msra.mxu0 %v789
        %791 = vmatprep.subr.mxu0 0.0
        %v792 = vand.u32 %v204, 4294901760
        %v793 = vsub.f32 %v204, %v792
        %v794 = vand.u32 %v793, 4294901760
        %v795 = vsub.f32 %v793, %v794
        %v796 = vand.u32 %v795, 4294901760
        %797 = vmatpush1.msra.mxu0 %v796
        %798 = vmatprep.subr.mxu0 0.0
        %799 = vmatpush2.msra.mxu0 0.0
        %800 = vmatprep.subr.mxu0 0.0
        %801 = vmatpush2.msra.mxu0 0.0
        %802 = vmatprep.subr.mxu0 0.0
        %803 = vmatpush2.msra.mxu0 0.0
        %804 = vmatprep.subr.mxu0 0.0
        %805 = vmatpush2.msra.mxu0 0.0
        %806 = vmatprep.subr.mxu0 0.0
        %807 = vmatpush2.msra.mxu0 0.0
        %808 = vmatprep.subr.mxu0 0.0
        %809 = vmatpush2.msra.mxu0 0.0
        %810 = vmatprep.subr.mxu0 0.0
        %811 = vmatpush2.msra.mxu0 0.0
        %812 = vmatprep.subr.mxu0 0.0
        %813 = vmatpush2.msra.mxu0 0.0
        %814 = vmatprep.subr.mxu0 0.0
        %815 = vmatpush2.msra.mxu0 0.0
        %816 = vmatprep.subr.mxu0 0.0
        %817 = vmatpush2.msra.mxu0 0.0
        %818 = vmatprep.subr.mxu0 0.0
        %819 = vmatpush2.msra.mxu0 0.0
        %820 = vmatprep.subr.mxu0 0.0
        %821 = vmatpush2.msra.mxu0 0.0
        %822 = vmatprep.subr.mxu0 0.0
        %823 = vmatpush2.msra.mxu0 0.0
        %824 = vmatprep.subr.mxu0 0.0
        %825 = vmatpush2.msra.mxu0 0.0
        %826 = vmatprep.subr.mxu0 0.0
        %827 = vmatpush2.msra.mxu0 0.0
        %828 = vmatprep.subr.mxu0 0.0
        %829 = vmatpush2.msra.mxu0 0.0
        %830 = vmatprep.mubr.f32.mxu0 0.0
        %v831 = vand.u32 %v677, 4294901760
        %832 = vmatmul.mubr.f32.gmra.mxu0 %v831
        %v833 = vpop.f32.mrf.mxu0
        %v834 = vadd.f32 %v753, %v833
        %v835 = vpop.f32.mrf.mxu0
        %836 = vdwg.mxu0
        %837 = vmatprep.subr.mxu0 0.0
        %838 = vmatpush1.msra.mxu0 0.0
        %839 = vmatprep.subr.mxu0 0.0
        %840 = vmatpush1.msra.mxu0 0.0
        %841 = vmatprep.subr.mxu0 0.0
        %842 = vmatpush1.msra.mxu0 0.0
        %843 = vmatprep.subr.mxu0 0.0
        %844 = vmatpush1.msra.mxu0 0.0
        %845 = vmatprep.subr.mxu0 0.0
        %846 = vmatpush1.msra.mxu0 0.0
        %847 = vmatprep.subr.mxu0 0.0
        %848 = vmatpush1.msra.mxu0 0.0
        %849 = vmatprep.subr.mxu0 0.0
        %850 = vmatpush1.msra.mxu0 0.0
        %851 = vmatprep.subr.mxu0 0.0
        %852 = vmatpush1.msra.mxu0 0.0
        %853 = vmatprep.subr.mxu0 0.0
        %854 = vmatpush1.msra.mxu0 0.0
        %855 = vmatprep.subr.mxu0 0.0
        %856 = vmatpush1.msra.mxu0 0.0
        %857 = vmatprep.subr.mxu0 0.0
        %858 = vmatpush1.msra.mxu0 0.0
        %859 = vmatprep.subr.mxu0 0.0
        %860 = vmatpush1.msra.mxu0 0.0
        %861 = vmatprep.subr.mxu0 0.0
        %862 = vmatpush1.msra.mxu0 0.0
        %863 = vmatprep.subr.mxu0 0.0
        %864 = vmatpush1.msra.mxu0 0.0
        %865 = vmatprep.subr.mxu0 0.0
        %v866 = vand.u32 %v205, 4294901760
        %v867 = vsub.f32 %v205, %v866
        %868 = vmatpush1.msra.mxu0 %v867
        %869 = vmatprep.subr.mxu0 0.0
        %v870 = vand.u32 %v204, 4294901760
        %v871 = vsub.f32 %v204, %v870
        %872 = vmatpush1.msra.mxu0 %v871
        %873 = vmatprep.subr.mxu0 0.0
        %874 = vmatpush2.msra.mxu0 0.0
        %875 = vmatprep.subr.mxu0 0.0
        %876 = vmatpush2.msra.mxu0 0.0
        %877 = vmatprep.subr.mxu0 0.0
        %878 = vmatpush2.msra.mxu0 0.0
        %879 = vmatprep.subr.mxu0 0.0
        %880 = vmatpush2.msra.mxu0 0.0
        %881 = vmatprep.subr.mxu0 0.0
        %882 = vmatpush2.msra.mxu0 0.0
        %883 = vmatprep.subr.mxu0 0.0
        %884 = vmatpush2.msra.mxu0 0.0
        %885 = vmatprep.subr.mxu0 0.0
        %886 = vmatpush2.msra.mxu0 0.0
        %887 = vmatprep.subr.mxu0 0.0
        %888 = vmatpush2.msra.mxu0 0.0
        %889 = vmatprep.subr.mxu0 0.0
        %890 = vmatpush2.msra.mxu0 0.0
        %891 = vmatprep.subr.mxu0 0.0
        %892 = vmatpush2.msra.mxu0 0.0
        %893 = vmatprep.subr.mxu0 0.0
        %894 = vmatpush2.msra.mxu0 0.0
        %895 = vmatprep.subr.mxu0 0.0
        %896 = vmatpush2.msra.mxu0 0.0
        %897 = vmatprep.subr.mxu0 0.0
        %898 = vmatpush2.msra.mxu0 0.0
        %899 = vmatprep.subr.mxu0 0.0
        %900 = vmatpush2.msra.mxu0 0.0
        %901 = vmatprep.subr.mxu0 0.0
        %902 = vmatpush2.msra.mxu0 0.0
        %903 = vmatprep.subr.mxu0 0.0
        %904 = vmatpush2.msra.mxu0 0.0
        %905 = vmatprep.mubr.f32.mxu0 0.0
        %v906 = vand.u32 %v677, 4294901760
        %v907 = vsub.f32 %v677, %v906
        %908 = vmatmul.mubr.f32.gmra.mxu0 %v907
        %v909 = vpop.f32.mrf.mxu0
        %v910 = vadd.f32 %v834, %v909
        %v911 = vpop.f32.mrf.mxu0
        %912 = vdwg.mxu0
        %913 = vmatprep.subr.mxu0 0.0
        %914 = vmatpush1.msra.mxu0 0.0
        %915 = vmatprep.subr.mxu0 0.0
        %916 = vmatpush1.msra.mxu0 0.0
        %917 = vmatprep.subr.mxu0 0.0
        %918 = vmatpush1.msra.mxu0 0.0
        %919 = vmatprep.subr.mxu0 0.0
        %920 = vmatpush1.msra.mxu0 0.0
        %921 = vmatprep.subr.mxu0 0.0
        %922 = vmatpush1.msra.mxu0 0.0
        %923 = vmatprep.subr.mxu0 0.0
        %924 = vmatpush1.msra.mxu0 0.0
        %925 = vmatprep.subr.mxu0 0.0
        %926 = vmatpush1.msra.mxu0 0.0
        %927 = vmatprep.subr.mxu0 0.0
        %928 = vmatpush1.msra.mxu0 0.0
        %929 = vmatprep.subr.mxu0 0.0
        %930 = vmatpush1.msra.mxu0 0.0
        %931 = vmatprep.subr.mxu0 0.0
        %932 = vmatpush1.msra.mxu0 0.0
        %933 = vmatprep.subr.mxu0 0.0
        %934 = vmatpush1.msra.mxu0 0.0
        %935 = vmatprep.subr.mxu0 0.0
        %936 = vmatpush1.msra.mxu0 0.0
        %937 = vmatprep.subr.mxu0 0.0
        %938 = vmatpush1.msra.mxu0 0.0
        %939 = vmatprep.subr.mxu0 0.0
        %940 = vmatpush1.msra.mxu0 0.0
        %941 = vmatprep.subr.mxu0 0.0
        %v942 = vand.u32 %v205, 4294901760
        %943 = vmatpush1.msra.mxu0 %v942
        %944 = vmatprep.subr.mxu0 0.0
        %v945 = vand.u32 %v204, 4294901760
        %946 = vmatpush1.msra.mxu0 %v945
        %947 = vmatprep.subr.mxu0 0.0
        %948 = vmatpush2.msra.mxu0 0.0
        %949 = vmatprep.subr.mxu0 0.0
        %950 = vmatpush2.msra.mxu0 0.0
        %951 = vmatprep.subr.mxu0 0.0
        %952 = vmatpush2.msra.mxu0 0.0
        %953 = vmatprep.subr.mxu0 0.0
        %954 = vmatpush2.msra.mxu0 0.0
        %955 = vmatprep.subr.mxu0 0.0
        %956 = vmatpush2.msra.mxu0 0.0
        %957 = vmatprep.subr.mxu0 0.0
        %958 = vmatpush2.msra.mxu0 0.0
        %959 = vmatprep.subr.mxu0 0.0
        %960 = vmatpush2.msra.mxu0 0.0
        %961 = vmatprep.subr.mxu0 0.0
        %962 = vmatpush2.msra.mxu0 0.0
        %963 = vmatprep.subr.mxu0 0.0
        %964 = vmatpush2.msra.mxu0 0.0
        %965 = vmatprep.subr.mxu0 0.0
        %966 = vmatpush2.msra.mxu0 0.0
        %967 = vmatprep.subr.mxu0 0.0
        %968 = vmatpush2.msra.mxu0 0.0
        %969 = vmatprep.subr.mxu0 0.0
        %970 = vmatpush2.msra.mxu0 0.0
        %971 = vmatprep.subr.mxu0 0.0
        %972 = vmatpush2.msra.mxu0 0.0
        %973 = vmatprep.subr.mxu0 0.0
        %974 = vmatpush2.msra.mxu0 0.0
        %975 = vmatprep.subr.mxu0 0.0
        %976 = vmatpush2.msra.mxu0 0.0
        %977 = vmatprep.subr.mxu0 0.0
        %978 = vmatpush2.msra.mxu0 0.0
        %979 = vmatprep.mubr.f32.mxu0 0.0
        %v980 = vand.u32 %v677, 4294901760
        %v981 = vsub.f32 %v677, %v980
        %v982 = vand.u32 %v981, 4294901760
        %983 = vmatmul.mubr.f32.gmra.mxu0 %v982
        %v984 = vpop.f32.mrf.mxu0
        %v985 = vadd.f32 %v910, %v984
        %v986 = vpop.f32.mrf.mxu0
        %987 = vdwg.mxu0
        %988 = vmatprep.subr.mxu0 0.0
        %989 = vmatpush1.msra.mxu0 0.0
        %990 = vmatprep.subr.mxu0 0.0
        %991 = vmatpush1.msra.mxu0 0.0
        %992 = vmatprep.subr.mxu0 0.0
        %993 = vmatpush1.msra.mxu0 0.0
        %994 = vmatprep.subr.mxu0 0.0
        %995 = vmatpush1.msra.mxu0 0.0
        %996 = vmatprep.subr.mxu0 0.0
        %997 = vmatpush1.msra.mxu0 0.0
        %998 = vmatprep.subr.mxu0 0.0
        %999 = vmatpush1.msra.mxu0 0.0
        %1000 = vmatprep.subr.mxu0 0.0
        %1001 = vmatpush1.msra.mxu0 0.0
        %1002 = vmatprep.subr.mxu0 0.0
        %1003 = vmatpush1.msra.mxu0 0.0
        %1004 = vmatprep.subr.mxu0 0.0
        %1005 = vmatpush1.msra.mxu0 0.0
        %1006 = vmatprep.subr.mxu0 0.0
        %1007 = vmatpush1.msra.mxu0 0.0
        %1008 = vmatprep.subr.mxu0 0.0
        %1009 = vmatpush1.msra.mxu0 0.0
        %1010 = vmatprep.subr.mxu0 0.0
        %1011 = vmatpush1.msra.mxu0 0.0
        %1012 = vmatprep.subr.mxu0 0.0
        %1013 = vmatpush1.msra.mxu0 0.0
        %1014 = vmatprep.subr.mxu0 0.0
        %1015 = vmatpush1.msra.mxu0 0.0
        %1016 = vmatprep.subr.mxu0 0.0
        %v1017 = vand.u32 %v205, 4294901760
        %v1018 = vsub.f32 %v205, %v1017
        %v1019 = vand.u32 %v1018, 4294901760
        %1020 = vmatpush1.msra.mxu0 %v1019
        %1021 = vmatprep.subr.mxu0 0.0
        %v1022 = vand.u32 %v204, 4294901760
        %v1023 = vsub.f32 %v204, %v1022
        %v1024 = vand.u32 %v1023, 4294901760
        %1025 = vmatpush1.msra.mxu0 %v1024
        %1026 = vmatprep.subr.mxu0 0.0
        %1027 = vmatpush2.msra.mxu0 0.0
        %1028 = vmatprep.subr.mxu0 0.0
        %1029 = vmatpush2.msra.mxu0 0.0
        %1030 = vmatprep.subr.mxu0 0.0
        %1031 = vmatpush2.msra.mxu0 0.0
        %1032 = vmatprep.subr.mxu0 0.0
        %1033 = vmatpush2.msra.mxu0 0.0
        %1034 = vmatprep.subr.mxu0 0.0
        %1035 = vmatpush2.msra.mxu0 0.0
        %1036 = vmatprep.subr.mxu0 0.0
        %1037 = vmatpush2.msra.mxu0 0.0
        %1038 = vmatprep.subr.mxu0 0.0
        %1039 = vmatpush2.msra.mxu0 0.0
        %1040 = vmatprep.subr.mxu0 0.0
        %1041 = vmatpush2.msra.mxu0 0.0
        %1042 = vmatprep.subr.mxu0 0.0
        %1043 = vmatpush2.msra.mxu0 0.0
        %1044 = vmatprep.subr.mxu0 0.0
        %1045 = vmatpush2.msra.mxu0 0.0
        %1046 = vmatprep.subr.mxu0 0.0
        %1047 = vmatpush2.msra.mxu0 0.0
        %1048 = vmatprep.subr.mxu0 0.0
        %1049 = vmatpush2.msra.mxu0 0.0
        %1050 = vmatprep.subr.mxu0 0.0
        %1051 = vmatpush2.msra.mxu0 0.0
        %1052 = vmatprep.subr.mxu0 0.0
        %1053 = vmatpush2.msra.mxu0 0.0
        %1054 = vmatprep.subr.mxu0 0.0
        %1055 = vmatpush2.msra.mxu0 0.0
        %1056 = vmatprep.subr.mxu0 0.0
        %1057 = vmatpush2.msra.mxu0 0.0
        %1058 = vmatprep.mubr.f32.mxu0 0.0
        %v1059 = vand.u32 %v677, 4294901760
        %1060 = vmatmul.mubr.f32.gmra.mxu0 %v1059
        %v1061 = vpop.f32.mrf.mxu0
        %v1062 = vadd.f32 %v985, %v1061
        %v1063 = vpop.f32.mrf.mxu0
        %1064 = vdwg.mxu0
        %1065 = vmatprep.subr.mxu0 0.0
        %1066 = vmatpush1.msra.mxu0 0.0
        %1067 = vmatprep.subr.mxu0 0.0
        %1068 = vmatpush1.msra.mxu0 0.0
        %1069 = vmatprep.subr.mxu0 0.0
        %1070 = vmatpush1.msra.mxu0 0.0
        %1071 = vmatprep.subr.mxu0 0.0
        %1072 = vmatpush1.msra.mxu0 0.0
        %1073 = vmatprep.subr.mxu0 0.0
        %1074 = vmatpush1.msra.mxu0 0.0
        %1075 = vmatprep.subr.mxu0 0.0
        %1076 = vmatpush1.msra.mxu0 0.0
        %1077 = vmatprep.subr.mxu0 0.0
        %1078 = vmatpush1.msra.mxu0 0.0
        %1079 = vmatprep.subr.mxu0 0.0
        %1080 = vmatpush1.msra.mxu0 0.0
        %1081 = vmatprep.subr.mxu0 0.0
        %1082 = vmatpush1.msra.mxu0 0.0
        %1083 = vmatprep.subr.mxu0 0.0
        %1084 = vmatpush1.msra.mxu0 0.0
        %1085 = vmatprep.subr.mxu0 0.0
        %1086 = vmatpush1.msra.mxu0 0.0
        %1087 = vmatprep.subr.mxu0 0.0
        %1088 = vmatpush1.msra.mxu0 0.0
        %1089 = vmatprep.subr.mxu0 0.0
        %1090 = vmatpush1.msra.mxu0 0.0
        %1091 = vmatprep.subr.mxu0 0.0
        %1092 = vmatpush1.msra.mxu0 0.0
        %1093 = vmatprep.subr.mxu0 0.0
        %v1094 = vand.u32 %v205, 4294901760
        %1095 = vmatpush1.msra.mxu0 %v1094
        %1096 = vmatprep.subr.mxu0 0.0
        %v1097 = vand.u32 %v204, 4294901760
        %1098 = vmatpush1.msra.mxu0 %v1097
        %1099 = vmatprep.subr.mxu0 0.0
        %1100 = vmatpush2.msra.mxu0 0.0
        %1101 = vmatprep.subr.mxu0 0.0
        %1102 = vmatpush2.msra.mxu0 0.0
        %1103 = vmatprep.subr.mxu0 0.0
        %1104 = vmatpush2.msra.mxu0 0.0
        %1105 = vmatprep.subr.mxu0 0.0
        %1106 = vmatpush2.msra.mxu0 0.0
        %1107 = vmatprep.subr.mxu0 0.0
        %1108 = vmatpush2.msra.mxu0 0.0
        %1109 = vmatprep.subr.mxu0 0.0
        %1110 = vmatpush2.msra.mxu0 0.0
        %1111 = vmatprep.subr.mxu0 0.0
        %1112 = vmatpush2.msra.mxu0 0.0
        %1113 = vmatprep.subr.mxu0 0.0
        %1114 = vmatpush2.msra.mxu0 0.0
        %1115 = vmatprep.subr.mxu0 0.0
        %1116 = vmatpush2.msra.mxu0 0.0
        %1117 = vmatprep.subr.mxu0 0.0
        %1118 = vmatpush2.msra.mxu0 0.0
        %1119 = vmatprep.subr.mxu0 0.0
        %1120 = vmatpush2.msra.mxu0 0.0
        %1121 = vmatprep.subr.mxu0 0.0
        %1122 = vmatpush2.msra.mxu0 0.0
        %1123 = vmatprep.subr.mxu0 0.0
        %1124 = vmatpush2.msra.mxu0 0.0
        %1125 = vmatprep.subr.mxu0 0.0
        %1126 = vmatpush2.msra.mxu0 0.0
        %1127 = vmatprep.subr.mxu0 0.0
        %1128 = vmatpush2.msra.mxu0 0.0
        %1129 = vmatprep.subr.mxu0 0.0
        %1130 = vmatpush2.msra.mxu0 0.0
        %1131 = vmatprep.mubr.f32.mxu0 0.0
        %v1132 = vand.u32 %v677, 4294901760
        %1133 = vmatmul.mubr.f32.gmra.mxu0 %v1132
        %v1134 = vpop.f32.mrf.mxu0
        %v1135 = vadd.f32 %v1062, %v1134
        %v1136 = vpop.f32.mrf.mxu0
        %1137 = vdwg.mxu0
        %vm1138 = vcmask 64512
        %1139 = vst.msk [vmem:[%s203] sm:$0xff] %vm1138, %v673
        %1141 = vrot.lane.b32.xlu0 %v673, 120
        %v1142 = vpop.permute.xlu0 %1141
        %s1144 = scalar_lea.vmem %s203, 8 [#allocation7]
        %1145 = vst.msk [vmem:[%s1144] sm:$0xff] %vm1138, %v1142
        %s1146 = scalar_lea.vmem %s203, 16 [#allocation7]
        %1147 = vst.msk [vmem:[%s1146] sm:$0xff] %vm1138, %v1135
        %1149 = vrot.lane.b32.xlu0 %v1135, 120
        %v1150 = vpop.permute.xlu0 %1149
        %s1152 = scalar_lea.vmem %s203, 24 [#allocation7]
        %1153 = vst.msk [vmem:[%s1152] sm:$0xff] %vm1138, %v1150
        %s1154 = sand.u32 %s102, 1
        %s1155 = scalar_lea.sflag [#allocation4], %s1154
        %s1156 = sand.u32 %s102, 1
        %s1157 = smul.addr %s1156, 32
        %s1158 = scalar_lea.vmem [#allocation7], %s1157
        // Predicated region
        $region37: #{tpu_custom_call.1} parent=27 // pred_check
          %p1159 = pneg %p112
        $region38: #{tpu_custom_call.1} parent=27 // pred_check_branch
          %1161 = sbr.rel (%p1159) target = $region40
        $region39: #{tpu_custom_call.1} parent=27 // pred_region
          %s1163 = ssub.s32 512, 512
          %1164 = vsyncadd %s1155, %s1163
          %s1165 = smul.addr %s26, 4
          %s1166 = sadd.s32 %s27, %s1165
          %s1167 = smul.addr %s25, 16
          %s1168 = sadd.s32 %s1166, %s1167
          %s1169 = smul.addr %s1168, 128
          %s1170 = scalar_lea.hbm %s2, %s1169
          %s1171 = sshll.u32 %s1158, 4
          %s1172 = int_to_ptr.vmem [resolvable:$true] %s1171
          %1177 = dma.vmem_to_hbm [thread:$0]  %s1172, 512, %s1170, %s1155, 128, 128, 8
        $region40: #{tpu_custom_call.1} parent=27 // pred_fallthru
          _
      $region28: #{tpu_custom_call.1} parent=5 // pred_fallthru
        _
      %p1178 = scmp.le.s32.totalorder 2, %s15
      // Predicated region
      $region41: #{tpu_custom_call.1} parent=5 // pred_check
        %p1179 = pneg %p1178
      $region42: #{tpu_custom_call.1} parent=5 // pred_check_branch
        %1181 = sbr.rel (%p1179) target = $region44
      $region43: #{tpu_custom_call.1} parent=5 // pred_region
        %s1182 = ssub.s32 %s15, 2
        // Predicated region
        $region45: #{tpu_custom_call.1} parent=43 // pred_check
          %p1183 = pneg %p118
        $region46: #{tpu_custom_call.1} parent=43 // pred_check_branch
          %1185 = sbr.rel (%p1183) target = $region48
        $region47: #{tpu_custom_call.1} parent=43 // pred_region
          %s1186 = sand.u32 %s103, 1
          %s1187 = scalar_lea.sflag [#allocation4], %s1186
          %s1188 = sand.u32 %s103, 1
          %s1189 = smul.addr %s1188, 32
          %s1190 = scalar_lea.vmem [#allocation7], %s1189
          %1191 = dma.done %s1187, 512
        $region48: #{tpu_custom_call.1} parent=43 // pred_fallthru
          _
      $region44: #{tpu_custom_call.1} parent=5 // pred_fallthru
        _
    $region6: #{tpu_custom_call.1} parent=1 // loop_footer
      %s19 = sadd.s32 1, %s15
    $region7: #{tpu_custom_call.1} parent=1 // loop_footer_branch
      %14 = sbr.rel target = $region3
    $region8: #{tpu_custom_call.1} parent=1 // loop_exit
      _
    %1192 = vsyncpa [#allocation3], 1
    %s1193 = scalar_lea.sflag [#allocation3], 1
    %1194 = vsyncpa %s1193, 1
    %1195 = vsyncpa [#allocation6], 1
    %1196 = vsyncpa [#allocation4], 1
    %s1197 = scalar_lea.sflag [#allocation4], 1
    %1198 = vsyncpa %s1197, 1

</llo_original>
